<compile_context>
chip_gen: v6e
topology: v6e:2x2x1
jax: 0.10.0
libtpu: 0.0.40
codegen_flags: <defaults>
</compile_context>

<pallas_src>
import math
from functools import partial

import numpy as np
import jax
import jax.numpy as jnp
from jax.experimental import pallas as pl
from jax.experimental.pallas import tpu as pltpu


_VMEM_LIMIT = 48 * 1024 * 1024   # headroom under v7x's 64 MiB physical VMEM
_ROW_BUDGET = 4 << 20            # per-buffer byte budget used when sizing row tiles


def _round_up(x, m):
    return ((x + m - 1) // m) * m


def _cdiv(a, b):
    return -(-a // b)


def _pick_tile(n, max_tile, min_steps=1, bytes_per_row=None):
    """Row-tile selection: multiple of 8, avoids pathological padding, keeps the
    grid's parallel step count >= min_steps (v7x has 2 TensorCores) and the
    per-buffer footprint under _ROW_BUDGET."""
    n = max(int(n), 1)
    max_tile = max(8, int(max_tile))
    if bytes_per_row:
        cap = max(8, (_ROW_BUDGET // int(bytes_per_row)) // 8 * 8)
        max_tile = min(max_tile, cap)
    n_tiles = max(_cdiv(n, max_tile), int(min_steps))
    tile = _round_up(_cdiv(n, n_tiles), 8)
    n_tiles = _cdiv(n, tile)
    return tile, n_tiles


def _pow(x, g):
    g = float(g)
    if g == 2.0:
        return x * x
    if g == 1.0:
        return x
    return x ** g


# ---------------------------------------------------------------------------
# Pallas kernel 1: per-batch fused focal class cost + L1 cdist.
#   C[b, i, j] = class_weight * cost_class[b, i]
#              + coord_weight * sum_d |out[b, i, d] - tgt[b, d, j]|
# Grid (bs, nq_tiles), both axes "parallel"; lane axis = padded target count.
# ---------------------------------------------------------------------------
def compute_cost_matrix_per_batch(pred_logits, pred_ctrl_points, tgt_ctrl_pad,
                                  class_weight, coord_weight, alpha, gamma):
    bs, nq, n_pts = (int(s) for s in pred_logits.shape[:3])
    D = int(pred_ctrl_points.shape[2]) * int(pred_ctrl_points.shape[3])
    max_gt = int(tgt_ctrl_pad.shape[1])
    G_pad = _round_up(max(max_gt, 1), 128)

    logits = pred_logits.reshape(bs, nq, n_pts)
    out_pts = pred_ctrl_points.reshape(bs, nq, D)
    tgt_t = jnp.transpose(tgt_ctrl_pad.reshape(bs, max_gt, D), (0, 2, 1))   # (bs, D, max_gt)
    tgt_t = jnp.pad(tgt_t, ((0, 0), (0, 0), (0, G_pad - max_gt)))

    # Ensure >= 2 total parallel grid steps so both v7x TensorCores get work.
    min_steps = 1 if bs >= 2 else 2
    TILE_NQ, n_tiles = _pick_tile(nq, 1024, min_steps=min_steps, bytes_per_row=G_pad * 4)
    NQ_pad = TILE_NQ * n_tiles
    if NQ_pad > nq:
        logits = jnp.pad(logits, ((0, 0), (0, NQ_pad - nq), (0, 0)))
        out_pts = jnp.pad(out_pts, ((0, 0), (0, NQ_pad - nq), (0, 0)))

    cw = float(class_weight)
    kw = float(coord_weight)
    a = float(alpha)

    def kernel(logits_ref, out_pts_ref, tgt_t_ref, c_ref):
        x = logits_ref[...].astype(jnp.float32)            # (TILE_NQ, n_pts)
        # stable sigmoid
        e = jnp.exp(-jnp.abs(x))
        inv = 1.0 / (1.0 + e)
        prob = jnp.where(x >= 0, inv, e * inv)
        # focal cost, matching the PyTorch reference (incl. the +1e-8 epsilon)
        neg = (1.0 - a) * _pow(prob, gamma) * (-jnp.log(1.0 - prob + 1e-8))
        pos = a * _pow(1.0 - prob, gamma) * (-jnp.log(prob + 1e-8))
        cost_class = jnp.mean(pos - neg, axis=-1, keepdims=True)          # (TILE_NQ, 1)

        # L1 cdist: full loads hoisted, init folded into d == 0.
        o = out_pts_ref[...].astype(jnp.float32)                          # (TILE_NQ, D)
        t = tgt_t_ref[...].astype(jnp.float32)                            # (D, G_pad)
        acc = jnp.abs(o[:, 0:1] - t[0:1, :])
        for d in range(1, D):
            acc = acc + jnp.abs(o[:, d:d + 1] - t[d:d + 1, :])

        c_ref[...] = cw * cost_class + kw * acc

    return pl.pallas_call(
        kernel,
        out_shape=jax.ShapeDtypeStruct((bs, NQ_pad, G_pad), jnp.float32),
        grid=(bs, n_tiles),
        in_specs=[pl.BlockSpec((None, TILE_NQ, n_pts), lambda b, i: (b, i, 0)),
                  pl.BlockSpec((None, TILE_NQ, D), lambda b, i: (b, i, 0)),
                  pl.BlockSpec((None, D, G_pad), lambda b, i: (b, 0, 0))],
        out_specs=pl.BlockSpec((None, TILE_NQ, G_pad), lambda b, i: (b, i, 0)),
        compiler_params=pltpu.CompilerParams(
            dimension_semantics=("parallel", "parallel"),
            vmem_limit_bytes=_VMEM_LIMIT),
    )(logits, out_pts, tgt_t)            # (bs, NQ_pad, G_pad); valid region [:, :nq, :max_gt]


# ---------------------------------------------------------------------------
# Pallas kernel 2: log_softmax over the vocabulary axis.
# Output stays 128-lane padded (consumed directly by the CTC gather).
# ---------------------------------------------------------------------------
def log_softmax_pallas(pred_text_logits):
    bs, nq, T, C = (int(s) for s in pred_text_logits.shape)
    N = bs * nq * T
    C_pad = _round_up(C, 128)
    TILE_N, n_tiles = _pick_tile(N, 4096, min_steps=2, bytes_per_row=C_pad * 4)
    N_pad = TILE_N * n_tiles

    x = pred_text_logits.reshape(N, C)
    # -1e30 lane padding leaves the softmax over the real lanes unchanged;
    # all-(-1e30) padded rows stay finite (no NaN).
    x = jnp.pad(x, ((0, N_pad - N), (0, C_pad - C)), constant_values=-1e30)

    def kernel(x_ref, o_ref):
        v = x_ref[...].astype(jnp.float32)
        m = jnp.max(v, axis=-1, keepdims=True)
        lse = jnp.log(jnp.sum(jnp.exp(v - m), axis=-1, keepdims=True))
        o_ref[...] = v - m - lse

    out = pl.pallas_call(
        kernel,
        out_shape=jax.ShapeDtypeStruct((N_pad, C_pad), jnp.float32),
        grid=(n_tiles,),
        in_specs=[pl.BlockSpec((TILE_N, C_pad), lambda i: (i, 0))],
        out_specs=pl.BlockSpec((TILE_N, C_pad), lambda i: (i, 0)),
        compiler_params=pltpu.CompilerParams(
            dimension_semantics=("parallel",),
            vmem_limit_bytes=_VMEM_LIMIT),
    )(x)
    return out[:N].reshape(bs, nq, T, C_pad)       # lane-padded layout kept downstream


# ---------------------------------------------------------------------------
# CTC forward algorithm (plain JAX, lax.scan), runs inside the single jit.
# TODO(synk): Pallas-able long term (one_hot(ext) MXU gather + VPU logaddexp),
#             but kept in plain JAX here: sequential, data-dependent recurrence.
# ---------------------------------------------------------------------------
def ctc_loss_single(log_probs, labels, length, blank):
    # log_probs: (T, C_pad) log-softmaxed; labels: (Lmax,); length: scalar int32
    Lmax = labels.shape[0]
    S = 2 * Lmax + 1
    neg_inf = jnp.float32(-jnp.inf)

    ext = jnp.full((S,), blank, dtype=jnp.int32).at[1::2].set(labels.astype(jnp.int32))
    ext_m2 = jnp.concatenate([jnp.full((2,), blank, jnp.int32), ext[:-2]])
    skip_ok = (ext != blank) & (ext != ext_m2)

    alpha0 = jnp.full((S,), neg_inf)
    alpha0 = alpha0.at[0].set(log_probs[0, blank])
    alpha0 = alpha0.at[1].set(jnp.where(length > 0, log_probs[0, ext[1]], neg_inf))

    def step(alpha, lp):
        a1 = jnp.concatenate([jnp.full((1,), neg_inf), alpha[:-1]])
        a2 = jnp.concatenate([jnp.full((2,), neg_inf), alpha[:-2]])
        a2 = jnp.where(skip_ok, a2, neg_inf)
        new = jnp.logaddexp(jnp.logaddexp(alpha, a1), a2) + lp[ext]
        return new, None

    alpha_T, _ = jax.lax.scan(step, alpha0, log_probs[1:])
    l1 = alpha_T[2 * length]
    l2 = jnp.where(length > 0, alpha_T[jnp.maximum(2 * length - 1, 0)], neg_inf)
    loss = -jnp.logaddexp(l1, l2)
    # zero_infinity=True: zero only infinite losses (NaNs would propagate, like PyTorch)
    return jnp.where(jnp.isinf(loss), jnp.float32(0.0), loss)


def text_cost_for_image(out_texts_b, texts_b, lens_b, blank):
    # out_texts_b: (nq, T, C_pad); texts_b: (max_gt, Lmax); lens_b: (max_gt,)
    per_target = jax.vmap(
        lambda lab, ln: jax.vmap(lambda lp: ctc_loss_single(lp, lab, ln, blank))(out_texts_b))
    costs = per_target(texts_b, lens_b)                                   # (max_gt, nq)
    costs = costs / jnp.maximum(lens_b, 1)[:, None].astype(jnp.float32)
    return costs.T                                                        # (nq, max_gt)


def _text_costs_all(out_texts, texts_pad, lens_pad, blank):
    return jax.vmap(text_cost_for_image, in_axes=(0, 0, 0, None))(
        out_texts, texts_pad, lens_pad, blank)                            # (bs, nq, max_gt)


# ---------------------------------------------------------------------------
# Single jit over the entire device-side path (both Pallas kernels, the CTC
# text cost, and the final add). One host sync follows for the Hungarian solve.
# ---------------------------------------------------------------------------
@partial(jax.jit, static_argnames=('class_weight', 'coord_weight', 'text_weight',
                                   'focal_alpha', 'focal_gamma', 'voc'))
def _device_total_cost(pred_logits, pred_ctrl_points, pred_text_logits,
                       tgt_ctrl_pad, texts_pad, lens_pad, *,
                       class_weight, coord_weight, text_weight,
                       focal_alpha, focal_gamma, voc):
    nq = pred_logits.shape[1]
    max_gt = tgt_ctrl_pad.shape[1]
    cost = compute_cost_matrix_per_batch(pred_logits, pred_ctrl_points, tgt_ctrl_pad,
                                         class_weight, coord_weight,
                                         focal_alpha, focal_gamma)        # (bs, NQ_pad, G_pad)
    log_probs = log_softmax_pallas(pred_text_logits)                      # (bs, nq, T, C_pad)
    text_costs = _text_costs_all(log_probs, texts_pad, lens_pad, voc)     # (bs, nq, max_gt)
    total = cost[:, :nq, :max_gt] + float(text_weight) * text_costs       # slice fuses with the add
    return total


# ---------------------------------------------------------------------------
# Host-side exact minimal-cost assignment (Jonker-Volgenant style Hungarian).
# ---------------------------------------------------------------------------
def _hungarian_min(cost):
    """cost: (n, m) with n <= m. Returns col_of_row (length n)."""
    cost = np.asarray(cost, dtype=np.float64)
    n, m = cost.shape
    INF = np.inf
    u = np.zeros(n + 1)
    v = np.zeros(m + 1)
    p = np.zeros(m + 1, dtype=np.int64)
    way = np.zeros(m + 1, dtype=np.int64)
    for i in range(1, n + 1):
        p[0] = i
        j0 = 0
        minv = np.full(m + 1, INF)
        used = np.zeros(m + 1, dtype=bool)
        while True:
            used[j0] = True
            i0 = p[j0]
            delta = INF
            j1 = 0
            for j in range(1, m + 1):
                if not used[j]:
                    cur = cost[i0 - 1, j - 1] - u[i0] - v[j]
                    if cur < minv[j]:
                        minv[j] = cur
                        way[j] = j0
                    if minv[j] < delta:
                        delta = minv[j]
                        j1 = j
            for j in range(m + 1):
                if used[j]:
                    u[p[j]] += delta
                    v[j] -= delta
                else:
                    minv[j] -= delta
            j0 = j1
            if p[j0] == 0:
                break
        while True:
            j1 = way[j0]
            p[j0] = p[j1]
            j0 = j1
            if j0 == 0:
                break
    col_of_row = np.zeros(n, dtype=np.int64)
    for j in range(1, m + 1):
        if p[j] != 0:
            col_of_row[p[j] - 1] = j - 1
    return col_of_row


def linear_sum_assignment_np(cost):
    cost = np.asarray(cost)
    nr, nc = cost.shape
    if nr <= nc:
        col_of_row = _hungarian_min(cost)
        rows = np.arange(nr, dtype=np.int64)
        cols = col_of_row.astype(np.int64)
    else:
        row_of_col = _hungarian_min(cost.T)
        rows = row_of_col.astype(np.int64)
        cols = np.arange(nc, dtype=np.int64)
        order = np.argsort(rows)
        rows, cols = rows[order], cols[order]
    return rows, cols


# ---------------------------------------------------------------------------
# Full matcher forward
# ---------------------------------------------------------------------------
def ctrl_point_hungarian_matcher(outputs, targets, class_weight=1.0, coord_weight=1.0,
                                 text_weight=1.0, focal_alpha=0.25, focal_gamma=2.0):
    sizes = [int(t['ctrl_points'].shape[0]) for t in targets]
    bs, nq = (int(s) for s in outputs['pred_logits'].shape[:2])
    n_pts = int(outputs['pred_logits'].shape[2])
    Cvoc = int(outputs['pred_text_logits'].shape[-1])
    voc = Cvoc - 1
    max_gt = max(max(sizes), 1)
    Lmax = int(targets[0]['texts'].shape[1])

    # Host-side per-batch target padding (variable-size ragged inputs).
    # NOTE: blank == text pad token (voc); padded label positions never enter the DP read path.
    tgt_ctrl_np = np.zeros((bs, max_gt, n_pts, 2), dtype=np.float32)
    texts_np = np.full((bs, max_gt, Lmax), voc, dtype=np.int32)
    lens_np = np.ones((bs, max_gt), dtype=np.int32)
    for b, t in enumerate(targets):
        ng = sizes[b]
        if ng == 0:
            continue
        cp = np.asarray(jax.device_get(t['ctrl_points']), dtype=np.float32)
        tx = np.asarray(jax.device_get(t['texts']), dtype=np.int32)
        tgt_ctrl_np[b, :ng] = cp.reshape(ng, n_pts, 2)
        texts_np[b, :ng] = tx
        lens_np[b, :ng] = np.maximum((tx != voc).sum(-1), 1)

    total = _device_total_cost(
        outputs['pred_logits'], outputs['pred_ctrl_points'], outputs['pred_text_logits'],
        jnp.asarray(tgt_ctrl_np), jnp.asarray(texts_np), jnp.asarray(lens_np),
        class_weight=float(class_weight), coord_weight=float(coord_weight),
        text_weight=float(text_weight), focal_alpha=float(focal_alpha),
        focal_gamma=float(focal_gamma), voc=voc)                          # (bs, nq, max_gt)

    total_np = np.asarray(jax.device_get(jax.block_until_ready(total)))   # single host sync

    # TODO(synk): Hungarian assignment is a sequential combinatorial algorithm; host-side.
    indices = []
    for b in range(bs):
        ng = sizes[b]
        if ng == 0:
            indices.append((np.zeros(0, np.int64), np.zeros(0, np.int64)))
            continue
        rows, cols = linear_sum_assignment_np(total_np[b, :, :ng])
        indices.append((rows.astype(np.int64), cols.astype(np.int64)))
    return indices


if __name__ == "__main__":
    key = jax.random.PRNGKey(0)
    bs, nq, n_pts, T, voc, Lmax = 2, 8, 4, 8, 6, 6
    k1, k2, k3, k4 = jax.random.split(key, 4)

    outputs = {
        'pred_logits': jax.random.normal(k1, (bs, nq, n_pts, 1), jnp.float32),
        'pred_ctrl_points': jax.random.uniform(k2, (bs, nq, n_pts, 2), jnp.float32),
        'pred_text_logits': jax.random.normal(k3, (bs, nq, T, voc + 1), jnp.float32),
    }

    sizes = [2, 3]
    lengths_all = [[3, 5], [2, 4, 6]]
    targets = []
    kk = k4
    for b, ng in enumerate(sizes):
        kk, ka, kb = jax.random.split(kk, 3)
        cps = jax.random.uniform(ka, (ng, n_pts, 2), jnp.float32)
        toks = jax.random.randint(kb, (ng, Lmax), 0, voc, dtype=jnp.int32)
        lens = jnp.array(lengths_all[b], dtype=jnp.int32)
        pos = jnp.arange(Lmax, dtype=jnp.int32)[None, :]
        toks = jnp.where(pos < lens[:, None], toks, voc)
        targets.append({'ctrl_points': cps, 'texts': toks})

    # ---- correctness check of the Pallas kernels vs. NumPy / jax.nn references ----
    max_gt = max(sizes)
    tgt_pad_np = np.zeros((bs, max_gt, n_pts, 2), np.float32)
    for b, t in enumerate(targets):
        tgt_pad_np[b, :sizes[b]] = np.asarray(t['ctrl_points'], np.float32)

    C_kern = compute_cost_matrix_per_batch(
        outputs['pred_logits'], outputs['pred_ctrl_points'], jnp.asarray(tgt_pad_np),
        1.0, 1.0, 0.25, 2.0)
    jax.block_until_ready(C_kern)
    C_kern = np.asarray(C_kern)
    for b in range(bs):
        ng = sizes[b]
        lg = np.asarray(outputs['pred_logits'], np.float32)[b].reshape(nq, n_pts)
        prob = 1.0 / (1.0 + np.exp(-lg))
        neg = 0.75 * prob ** 2 * (-np.log(1.0 - prob + 1e-8))
        pos = 0.25 * (1.0 - prob) ** 2 * (-np.log(prob + 1e-8))
        cls = (pos - neg).mean(-1, keepdims=True)
        o = np.asarray(outputs['pred_ctrl_points'], np.float32)[b].reshape(nq, -1)
        tg = tgt_pad_np[b, :ng].reshape(ng, -1)
        cd = np.abs(o[:, None, :] - tg[None, :, :]).sum(-1)
        np.testing.assert_allclose(C_kern[b, :nq, :ng], cls + cd, rtol=1e-4, atol=1e-4)

    lp = log_softmax_pallas(outputs['pred_text_logits'])
    jax.block_until_ready(lp)
    lp_ref = jax.nn.log_softmax(outputs['pred_text_logits'].astype(jnp.float32), axis=-1)
    np.testing.assert_allclose(np.asarray(lp)[..., :voc + 1], np.asarray(lp_ref),
                               rtol=1e-4, atol=1e-4)

    # ---- full matcher forward ----
    indices = ctrl_point_hungarian_matcher(outputs, targets)
    assert len(indices) == bs
    for b, (rows, cols) in enumerate(indices):
        assert rows.shape[0] == sizes[b] and cols.shape[0] == sizes[b]
        assert len(set(rows.tolist())) == sizes[b]          # distinct queries
        assert sorted(cols.tolist()) == list(range(sizes[b]))  # every target matched once
    print("KERNEL_OK")
</pallas_src>

<mosaic_0001>
module attributes {stable_mosaic.version = 11 : i64} {
  func.func @kernel(%arg0: i32, %arg1: i32, %arg2: memref<1x8x4xf32, #tpu.memory_space<vmem>>, %arg3: memref<1x8x8xf32, #tpu.memory_space<vmem>>, %arg4: memref<1x8x128xf32, #tpu.memory_space<vmem>>, %arg5: memref<1x8x128xf32, #tpu.memory_space<vmem>>) attributes {dimension_semantics = [#tpu.dimension_semantics<parallel>, #tpu.dimension_semantics<parallel>], iteration_bounds = array<i64: 2, 1>, scalar_prefetch = 0 : i64, scratch_operands = 0 : i64, tpu.core_type = #tpu.core_type<tc>, window_params = [{transform_indices = @transform_0, window_bounds = array<i64: 1, 8, 4>}, {transform_indices = @transform_1, window_bounds = array<i64: 1, 8, 8>}, {transform_indices = @transform_2, window_bounds = array<i64: 1, 8, 128>}, {transform_indices = @transform_3, window_bounds = array<i64: 1, 8, 128>}]} {
    %c0 = arith.constant 0 : index
    %c0_0 = arith.constant 0 : index
    %c0_1 = arith.constant 0 : index
    %0 = vector.load %arg2[%c0, %c0_0, %c0_1] : memref<1x8x4xf32, #tpu.memory_space<vmem>>, vector<1x8x4xf32>
    %1 = vector.shape_cast %0 : vector<1x8x4xf32> to vector<8x4xf32>
    %2 = math.absf %1 : vector<8x4xf32>
    %cst = arith.constant 0.000000e+00 : f32
    %3 = vector.broadcast %cst : f32 to vector<8x4xf32>
    %4 = arith.subf %3, %2 : vector<8x4xf32>
    %5 = math.exp %4 : vector<8x4xf32>
    %cst_2 = arith.constant 1.000000e+00 : f32
    %6 = vector.broadcast %cst_2 : f32 to vector<8x4xf32>
    %7 = arith.addf %6, %5 : vector<8x4xf32>
    %cst_3 = arith.constant 1.000000e+00 : f32
    %8 = vector.broadcast %cst_3 : f32 to vector<8x4xf32>
    %9 = arith.divf %8, %7 : vector<8x4xf32>
    %cst_4 = arith.constant 0.000000e+00 : f32
    %10 = vector.broadcast %cst_4 : f32 to vector<8x4xf32>
    %11 = arith.cmpf oge, %1, %10 : vector<8x4xf32>
    %12 = arith.mulf %5, %9 : vector<8x4xf32>
    %13 = arith.select %11, %9, %12 : vector<8x4xi1>, vector<8x4xf32>
    %14 = arith.mulf %13, %13 : vector<8x4xf32>
    %cst_5 = arith.constant 7.500000e-01 : f32
    %15 = vector.broadcast %cst_5 : f32 to vector<8x4xf32>
    %16 = arith.mulf %15, %14 : vector<8x4xf32>
    %cst_6 = arith.constant 1.000000e+00 : f32
    %17 = vector.broadcast %cst_6 : f32 to vector<8x4xf32>
    %18 = arith.subf %17, %13 : vector<8x4xf32>
    %cst_7 = arith.constant 9.99999993E-9 : f32
    %19 = vector.broadcast %cst_7 : f32 to vector<8x4xf32>
    %20 = arith.addf %18, %19 : vector<8x4xf32>
    %21 = math.log %20 : vector<8x4xf32>
    %cst_8 = arith.constant 0.000000e+00 : f32
    %22 = vector.broadcast %cst_8 : f32 to vector<8x4xf32>
    %23 = arith.subf %22, %21 : vector<8x4xf32>
    %24 = arith.mulf %16, %23 : vector<8x4xf32>
    %cst_9 = arith.constant 1.000000e+00 : f32
    %25 = vector.broadcast %cst_9 : f32 to vector<8x4xf32>
    %26 = arith.subf %25, %13 : vector<8x4xf32>
    %27 = arith.mulf %26, %26 : vector<8x4xf32>
    %cst_10 = arith.constant 2.500000e-01 : f32
    %28 = vector.broadcast %cst_10 : f32 to vector<8x4xf32>
    %29 = arith.mulf %28, %27 : vector<8x4xf32>
    %cst_11 = arith.constant 9.99999993E-9 : f32
    %30 = vector.broadcast %cst_11 : f32 to vector<8x4xf32>
    %31 = arith.addf %13, %30 : vector<8x4xf32>
    %32 = math.log %31 : vector<8x4xf32>
    %cst_12 = arith.constant 0.000000e+00 : f32
    %33 = vector.broadcast %cst_12 : f32 to vector<8x4xf32>
    %34 = arith.subf %33, %32 : vector<8x4xf32>
    %35 = arith.mulf %29, %34 : vector<8x4xf32>
    %36 = arith.subf %35, %24 : vector<8x4xf32>
    %cst_13 = arith.constant dense<0.000000e+00> : vector<8xf32>
    %37 = vector.multi_reduction <add>, %36, %cst_13 [1] : vector<8x4xf32> to vector<8xf32>
    %38 = vector.shape_cast %37 : vector<8xf32> to vector<8x1xf32>
    %cst_14 = arith.constant 4.000000e+00 : f32
    %39 = vector.broadcast %cst_14 : f32 to vector<8x1xf32>
    %40 = arith.divf %38, %39 : vector<8x1xf32>
    %c0_15 = arith.constant 0 : index
    %c0_16 = arith.constant 0 : index
    %c0_17 = arith.constant 0 : index
    %41 = vector.load %arg3[%c0_15, %c0_16, %c0_17] : memref<1x8x8xf32, #tpu.memory_space<vmem>>, vector<1x8x8xf32>
    %42 = vector.shape_cast %41 : vector<1x8x8xf32> to vector<8x8xf32>
    %c0_18 = arith.constant 0 : index
    %c0_19 = arith.constant 0 : index
    %c0_20 = arith.constant 0 : index
    %43 = vector.load %arg4[%c0_18, %c0_19, %c0_20] : memref<1x8x128xf32, #tpu.memory_space<vmem>>, vector<1x8x128xf32>
    %44 = vector.shape_cast %43 : vector<1x8x128xf32> to vector<8x128xf32>
    %45 = vector.extract_strided_slice %42 {offsets = [0, 0], sizes = [8, 1], strides = [1, 1]} : vector<8x8xf32> to vector<8x1xf32>
    %46 = vector.extract_strided_slice %44 {offsets = [0, 0], sizes = [1, 128], strides = [1, 1]} : vector<8x128xf32> to vector<1x128xf32>
    %47 = vector.broadcast %45 : vector<8x1xf32> to vector<8x128xf32>
    %48 = vector.broadcast %46 : vector<1x128xf32> to vector<8x128xf32>
    %49 = arith.subf %47, %48 : vector<8x128xf32>
    %50 = math.absf %49 : vector<8x128xf32>
    %51 = vector.extract_strided_slice %42 {offsets = [0, 1], sizes = [8, 1], strides = [1, 1]} : vector<8x8xf32> to vector<8x1xf32>
    %52 = vector.extract_strided_slice %44 {offsets = [1, 0], sizes = [1, 128], strides = [1, 1]} : vector<8x128xf32> to vector<1x128xf32>
    %53 = vector.broadcast %51 : vector<8x1xf32> to vector<8x128xf32>
    %54 = vector.broadcast %52 : vector<1x128xf32> to vector<8x128xf32>
    %55 = arith.subf %53, %54 : vector<8x128xf32>
    %56 = math.absf %55 : vector<8x128xf32>
    %57 = arith.addf %50, %56 : vector<8x128xf32>
    %58 = vector.extract_strided_slice %42 {offsets = [0, 2], sizes = [8, 1], strides = [1, 1]} : vector<8x8xf32> to vector<8x1xf32>
    %59 = vector.extract_strided_slice %44 {offsets = [2, 0], sizes = [1, 128], strides = [1, 1]} : vector<8x128xf32> to vector<1x128xf32>
    %60 = vector.broadcast %58 : vector<8x1xf32> to vector<8x128xf32>
    %61 = vector.broadcast %59 : vector<1x128xf32> to vector<8x128xf32>
    %62 = arith.subf %60, %61 : vector<8x128xf32>
    %63 = math.absf %62 : vector<8x128xf32>
    %64 = arith.addf %57, %63 : vector<8x128xf32>
    %65 = vector.extract_strided_slice %42 {offsets = [0, 3], sizes = [8, 1], strides = [1, 1]} : vector<8x8xf32> to vector<8x1xf32>
    %66 = vector.extract_strided_slice %44 {offsets = [3, 0], sizes = [1, 128], strides = [1, 1]} : vector<8x128xf32> to vector<1x128xf32>
    %67 = vector.broadcast %65 : vector<8x1xf32> to vector<8x128xf32>
    %68 = vector.broadcast %66 : vector<1x128xf32> to vector<8x128xf32>
    %69 = arith.subf %67, %68 : vector<8x128xf32>
    %70 = math.absf %69 : vector<8x128xf32>
    %71 = arith.addf %64, %70 : vector<8x128xf32>
    %72 = vector.extract_strided_slice %42 {offsets = [0, 4], sizes = [8, 1], strides = [1, 1]} : vector<8x8xf32> to vector<8x1xf32>
    %73 = vector.extract_strided_slice %44 {offsets = [4, 0], sizes = [1, 128], strides = [1, 1]} : vector<8x128xf32> to vector<1x128xf32>
    %74 = vector.broadcast %72 : vector<8x1xf32> to vector<8x128xf32>
    %75 = vector.broadcast %73 : vector<1x128xf32> to vector<8x128xf32>
    %76 = arith.subf %74, %75 : vector<8x128xf32>
    %77 = math.absf %76 : vector<8x128xf32>
    %78 = arith.addf %71, %77 : vector<8x128xf32>
    %79 = vector.extract_strided_slice %42 {offsets = [0, 5], sizes = [8, 1], strides = [1, 1]} : vector<8x8xf32> to vector<8x1xf32>
    %80 = vector.extract_strided_slice %44 {offsets = [5, 0], sizes = [1, 128], strides = [1, 1]} : vector<8x128xf32> to vector<1x128xf32>
    %81 = vector.broadcast %79 : vector<8x1xf32> to vector<8x128xf32>
    %82 = vector.broadcast %80 : vector<1x128xf32> to vector<8x128xf32>
    %83 = arith.subf %81, %82 : vector<8x128xf32>
    %84 = math.absf %83 : vector<8x128xf32>
    %85 = arith.addf %78, %84 : vector<8x128xf32>
    %86 = vector.extract_strided_slice %42 {offsets = [0, 6], sizes = [8, 1], strides = [1, 1]} : vector<8x8xf32> to vector<8x1xf32>
    %87 = vector.extract_strided_slice %44 {offsets = [6, 0], sizes = [1, 128], strides = [1, 1]} : vector<8x128xf32> to vector<1x128xf32>
    %88 = vector.broadcast %86 : vector<8x1xf32> to vector<8x128xf32>
    %89 = vector.broadcast %87 : vector<1x128xf32> to vector<8x128xf32>
    %90 = arith.subf %88, %89 : vector<8x128xf32>
    %91 = math.absf %90 : vector<8x128xf32>
    %92 = arith.addf %85, %91 : vector<8x128xf32>
    %93 = vector.extract_strided_slice %42 {offsets = [0, 7], sizes = [8, 1], strides = [1, 1]} : vector<8x8xf32> to vector<8x1xf32>
    %94 = vector.extract_strided_slice %44 {offsets = [7, 0], sizes = [1, 128], strides = [1, 1]} : vector<8x128xf32> to vector<1x128xf32>
    %95 = vector.broadcast %93 : vector<8x1xf32> to vector<8x128xf32>
    %96 = vector.broadcast %94 : vector<1x128xf32> to vector<8x128xf32>
    %97 = arith.subf %95, %96 : vector<8x128xf32>
    %98 = math.absf %97 : vector<8x128xf32>
    %99 = arith.addf %92, %98 : vector<8x128xf32>
    %cst_21 = arith.constant 1.000000e+00 : f32
    %100 = vector.broadcast %cst_21 : f32 to vector<8x1xf32>
    %101 = arith.mulf %100, %40 : vector<8x1xf32>
    %cst_22 = arith.constant 1.000000e+00 : f32
    %102 = vector.broadcast %cst_22 : f32 to vector<8x128xf32>
    %103 = arith.mulf %102, %99 : vector<8x128xf32>
    %104 = vector.broadcast %101 : vector<8x1xf32> to vector<8x128xf32>
    %105 = arith.addf %104, %103 : vector<8x128xf32>
    %c0_23 = arith.constant 0 : index
    %c0_24 = arith.constant 0 : index
    %c0_25 = arith.constant 0 : index
    %106 = vector.load %arg5[%c0_23, %c0_24, %c0_25] : memref<1x8x128xf32, #tpu.memory_space<vmem>>, vector<1x8x128xf32>
    %107 = vector.shape_cast %106 : vector<1x8x128xf32> to vector<8x128xf32>
    %108 = vector.shape_cast %105 : vector<8x128xf32> to vector<1x8x128xf32>
    tpu.vector_store %arg5[%c0_23, %c0_24, %c0_25], %108 {strides = array<i32>} : memref<1x8x128xf32, #tpu.memory_space<vmem>>, vector<1x8x128xf32>,
    return
  }
  func.func @transform_0(%arg0: i32, %arg1: i32) -> (i32, i32, i32) {
    %c0_i32 = arith.constant 0 : i32
    %c0_i32_0 = arith.constant 0 : i32
    return %arg0, %arg1, %c0_i32 : i32, i32, i32
  }
  func.func @transform_1(%arg0: i32, %arg1: i32) -> (i32, i32, i32) {
    %c0_i32 = arith.constant 0 : i32
    %c0_i32_0 = arith.constant 0 : i32
    return %arg0, %arg1, %c0_i32 : i32, i32, i32
  }
  func.func @transform_2(%arg0: i32, %arg1: i32) -> (i32, i32, i32) {
    %c0_i32 = arith.constant 0 : i32
    %c0_i32_0 = arith.constant 0 : i32
    %c0_i32_1 = arith.constant 0 : i32
    return %arg0, %c0_i32, %c0_i32_0 : i32, i32, i32
  }
  func.func @transform_3(%arg0: i32, %arg1: i32) -> (i32, i32, i32) {
    %c0_i32 = arith.constant 0 : i32
    %c0_i32_0 = arith.constant 0 : i32
    return %arg0, %arg1, %c0_i32 : i32, i32, i32
  }
}

</mosaic_0001>

<llo_original>
// kernel: tpu_custom_call.1
$region0: #{tpu_custom_call.1}
  #allocation0 [shape = 'u32[]', space=smem, size = 0x4, offset = 0x4, fixed_abs, tag = 'smem constant byte address 0x4 - core index']
  #allocation1 [shape = 'u32[144,128]{1,0:T(1,128)}', space=vmem, size = 0x12000, scoped, tag = 'internal scratch']
  %s0 = inlined_call_operand.vmem [shape: f32[2,8,4], index: 0, kind: input, shape index: {}]
  %s1 = inlined_call_operand.vmem [shape: f32[2,8,8], index: 1, kind: input, shape index: {}]
  %s2 = inlined_call_operand.hbm [shape: f32[2,8,128], index: 2, kind: input, shape index: {}]
  %s3 = inlined_call_operand.hbm [shape: f32[2,8,128], index: 3, kind: output, shape index: {}]
  %s4 = sld [smem:[#allocation0]]
  $region49: #{tpu_custom_call.1} parent=0
    _
  %s6 = ssub.s32 1, %s4
  %s7 = scalar_select 0, %s6, %s4
  $region1: #{tpu_custom_call.1} parent=0
    #allocation2 [shape = 'u8[8192]{0}', space=vmem, size = 0x2000, scoped, tag = 'input window, operand 2']
    #allocation3 [shape = 's32[2]{0}', space=sflag, size = 0x8, scoped, tag = 'scoped memory for tpu_custom_call.1']
    #allocation4 [shape = 's32[2]{0}', space=sflag, size = 0x8, scoped, tag = 'scoped memory for tpu_custom_call.1']
    #allocation5 [shape = 'u8[8192]{0}', space=vmem, size = 0x2000, scoped, tag = 'output window, operand 0']
    %8 = vsyncpa [#allocation3], 0
    %s9 = scalar_lea.sflag [#allocation3], 1
    %10 = vsyncpa %s9, 0
    %11 = vsyncpa [#allocation4], 0
    %s12 = scalar_lea.sflag [#allocation4], 1
    %13 = vsyncpa %s12, 0
    loop: start=0, step=1, limit=4
    $region2: #{tpu_custom_call.1} parent=1 // loop_pre_header
      _
    $region3: #{tpu_custom_call.1} parent=1 // loop_header
      %s15 = sphi 0, %s19
      %p16 = scmp.ge.s32.totalorder %s15, 4
      %s22 = sphi 0, %s34
      %s23 = sphi 0, %s30
      %s24 = sphi 0, %s22
      %s25 = sphi 0, %s23
      %s26 = sphi 0, %s24
      %s27 = sphi 0, %s25
      %s39 = sphi 0, %s41
      %s42 = sphi 0, %s39
      %s43 = sphi 0, %s42
      %s59 = sphi 0, %s43
      %s67 = sphi 0, %s69
      %s70 = sphi 0, %s67
      %s71 = sphi 0, %s70
      %s87 = sphi 0, %s71
      %s93 = sphi 0, %s95
      %s96 = sphi 0, %s93
      %s97 = sphi 0, %s96
      %s113 = sphi 0, %s97
      %s121 = sphi 0, %s123
      %s124 = sphi 0, %s121
      %s125 = sphi 0, %s124
      %s141 = sphi 0, %s125
    $region4: #{tpu_custom_call.1} parent=1 // loop_header_branch
      %18 = sbr.rel (%p16) target = $region8
    $region5: #{tpu_custom_call.1} parent=1 // loop_body
      %s20 = ssub.s32 %s15, 1
      %s21 = ssub.s32 %s15, 2
      %s28 = sadd.s32 1, %s23
      %p29 = scmp.ge.s32.totalorder %s28, 1
      %s30 = scalar_select %p29, 0, %s28
      %s31 = sadd.s32 1, %s22
      %s32 = scalar_select %p29, %s31, %s22
      %p33 = scmp.ge.s32.totalorder %s32, 2
      %s34 = scalar_select %p33, 0, %s32
      %s35 = ssub.s32 %s22, %s34
      %s36 = ssub.s32 %s23, %s30
      %s37 = sor.u32 %s35, %s36
      %p38 = scmp.eq.s32.totalorder %s37, 0
      %s40 = sadd.s32 %s39, 1
      %s41 = scalar_select %p38, %s39, %s40
      %p44 = pneg %p38
      %p45 = scmp.eq.s32.totalorder %s15, 1
      %p46 = por %p44, %p45
      %p47 = scmp.ne.s32.totalorder %s39, %s42
      %p48 = scmp.eq.s32.totalorder %s15, 0
      %p49 = por %p47, %p48
      %p50 = scmp.ne.s32.totalorder %s39, %s42
      %p51 = scmp.eq.s32.totalorder %s20, 1
      %p52 = por %p50, %p51
      %p53 = scmp.ne.s32.totalorder %s42, %s43
      %p54 = scmp.eq.s32.totalorder %s20, 0
      %p55 = por %p53, %p54
      %p56 = scmp.ne.s32.totalorder %s42, %s43
      %p57 = scmp.eq.s32.totalorder %s21, 1
      %p58 = por %p56, %p57
      %p60 = scmp.ne.s32.totalorder %s43, %s59
      %p61 = scmp.eq.s32.totalorder %s21, 0
      %p62 = por %p60, %p61
      %s63 = ssub.s32 %s22, %s34
      %s64 = ssub.s32 %s23, %s30
      %s65 = sor.u32 %s63, %s64
      %p66 = scmp.eq.s32.totalorder %s65, 0
      %s68 = sadd.s32 %s67, 1
      %s69 = scalar_select %p66, %s67, %s68
      %p72 = pneg %p66
      %p73 = scmp.eq.s32.totalorder %s15, 1
      %p74 = por %p72, %p73
      %p75 = scmp.ne.s32.totalorder %s67, %s70
      %p76 = scmp.eq.s32.totalorder %s15, 0
      %p77 = por %p75, %p76
      %p78 = scmp.ne.s32.totalorder %s67, %s70
      %p79 = scmp.eq.s32.totalorder %s20, 1
      %p80 = por %p78, %p79
      %p81 = scmp.ne.s32.totalorder %s70, %s71
      %p82 = scmp.eq.s32.totalorder %s20, 0
      %p83 = por %p81, %p82
      %p84 = scmp.ne.s32.totalorder %s70, %s71
      %p85 = scmp.eq.s32.totalorder %s21, 1
      %p86 = por %p84, %p85
      %p88 = scmp.ne.s32.totalorder %s71, %s87
      %p89 = scmp.eq.s32.totalorder %s21, 0
      %p90 = por %p88, %p89
      %s91 = ssub.s32 %s22, %s34
      %p92 = scmp.eq.s32.totalorder %s91, 0
      %s94 = sadd.s32 %s93, 1
      %s95 = scalar_select %p92, %s93, %s94
      %p98 = pneg %p92
      %p99 = scmp.eq.s32.totalorder %s15, 1
      %p100 = por %p98, %p99
      %p101 = scmp.ne.s32.totalorder %s93, %s96
      %p102 = scmp.eq.s32.totalorder %s15, 0
      %p103 = por %p101, %p102
      %p104 = scmp.ne.s32.totalorder %s93, %s96
      %p105 = scmp.eq.s32.totalorder %s20, 1
      %p106 = por %p104, %p105
      %p107 = scmp.ne.s32.totalorder %s96, %s97
      %p108 = scmp.eq.s32.totalorder %s20, 0
      %p109 = por %p107, %p108
      %p110 = scmp.ne.s32.totalorder %s96, %s97
      %p111 = scmp.eq.s32.totalorder %s21, 1
      %p112 = por %p110, %p111
      %p114 = scmp.ne.s32.totalorder %s97, %s113
      %p115 = scmp.eq.s32.totalorder %s21, 0
      %p116 = por %p114, %p115
      %s117 = ssub.s32 %s22, %s34
      %s118 = ssub.s32 %s23, %s30
      %s119 = sor.u32 %s117, %s118
      %p120 = scmp.eq.s32.totalorder %s119, 0
      %s122 = sadd.s32 %s121, 1
      %s123 = scalar_select %p120, %s121, %s122
      %p126 = pneg %p120
      %p127 = scmp.eq.s32.totalorder %s15, 1
      %p128 = por %p126, %p127
      %p129 = scmp.ne.s32.totalorder %s121, %s124
      %p130 = scmp.eq.s32.totalorder %s15, 0
      %p131 = por %p129, %p130
      %p132 = scmp.ne.s32.totalorder %s121, %s124
      %p133 = scmp.eq.s32.totalorder %s20, 1
      %p134 = por %p132, %p133
      %p135 = scmp.ne.s32.totalorder %s124, %s125
      %p136 = scmp.eq.s32.totalorder %s20, 0
      %p137 = por %p135, %p136
      %p138 = scmp.ne.s32.totalorder %s124, %s125
      %p139 = scmp.eq.s32.totalorder %s21, 1
      %p140 = por %p138, %p139
      %p142 = scmp.ne.s32.totalorder %s125, %s141
      %p143 = scmp.eq.s32.totalorder %s21, 0
      %p144 = por %p142, %p143
      %p145 = scmp.le.s32.totalorder 1, %s15
      %p146 = scmp.lt.s32.totalorder %s15, 3
      %p147 = pnand %p145, %p146
      %p148 = pneg %p147
      // Predicated region
      $region9: #{tpu_custom_call.1} parent=5 // pred_check
        _
      $region10: #{tpu_custom_call.1} parent=5 // pred_check_branch
        %150 = sbr.rel (%p147) target = $region12
      $region11: #{tpu_custom_call.1} parent=5 // pred_region
        %s151 = ssub.s32 %s15, 1
      $region12: #{tpu_custom_call.1} parent=5 // pred_fallthru
        _
      %p152 = scmp.lt.s32.totalorder %s15, 2
      // Predicated region
      $region13: #{tpu_custom_call.1} parent=5 // pred_check
        %p153 = pneg %p152
      $region14: #{tpu_custom_call.1} parent=5 // pred_check_branch
        %155 = sbr.rel (%p153) target = $region16
      $region15: #{tpu_custom_call.1} parent=5 // pred_region
        // Predicated region
        $region17: #{tpu_custom_call.1} parent=15 // pred_check
          %p156 = pneg %p49
        $region18: #{tpu_custom_call.1} parent=15 // pred_check_branch
          %158 = sbr.rel (%p156) target = $region20
        $region19: #{tpu_custom_call.1} parent=15 // pred_region
          %p159 = scmp.lt.s32.totalorder %s22, 1
          %s160 = scalar_select %p159, %s22, 1
          %p161 = scmp.lt.s32.totalorder %s23, 0
          %s162 = scalar_select %p161, %s23, 0
          %s163 = sadd.s32 %s162, %s160
          %s164 = smul.addr %s163, 8
          %s165 = scalar_lea.vmem %s0, %s164
        $region20: #{tpu_custom_call.1} parent=15 // pred_fallthru
          _
        // Predicated region
        $region21: #{tpu_custom_call.1} parent=15 // pred_check
          %p166 = pneg %p77
        $region22: #{tpu_custom_call.1} parent=15 // pred_check_branch
          %168 = sbr.rel (%p166) target = $region24
        $region23: #{tpu_custom_call.1} parent=15 // pred_region
          %p169 = scmp.lt.s32.totalorder %s22, 1
          %s170 = scalar_select %p169, %s22, 1
          %p171 = scmp.lt.s32.totalorder %s23, 0
          %s172 = scalar_select %p171, %s23, 0
          %s173 = sadd.s32 %s172, %s170
          %s174 = smul.addr %s173, 8
          %s175 = scalar_lea.vmem %s1, %s174
        $region24: #{tpu_custom_call.1} parent=15 // pred_fallthru
          _
        // Predicated region
        $region25: #{tpu_custom_call.1} parent=15 // pred_check
          %p176 = pneg %p103
        $region26: #{tpu_custom_call.1} parent=15 // pred_check_branch
          %178 = sbr.rel (%p176) target = $region28
        $region27: #{tpu_custom_call.1} parent=15 // pred_region
          %s179 = sand.u32 %s93, 1
          %s180 = scalar_lea.sflag [#allocation3], %s179
          %s181 = sand.u32 %s93, 1
          %s182 = smul.addr %s181, 8
          %s183 = scalar_lea.vmem [#allocation2], %s182
          %s185 = ssub.s32 128, 128
          %186 = vsyncadd %s180, %s185
          %s187 = smul.addr %s22, 128
          %s188 = scalar_lea.hbm %s2, %s187
          %s190 = sshll.u32 %s183, 4
          %s191 = int_to_ptr.vmem [resolvable:$true] %s190
          %193 = dma.hbm_to_vmem [thread:$0]  %s188, 128, %s191, %s180
        $region28: #{tpu_custom_call.1} parent=15 // pred_fallthru
          _
      $region16: #{tpu_custom_call.1} parent=5 // pred_fallthru
        _
      %p194 = scmp.le.s32.totalorder 1, %s15
      %p195 = scmp.lt.s32.totalorder %s15, 3
      %p196 = pnand %p194, %p195
      %p197 = pneg %p196
      // Predicated region
      $region29: #{tpu_custom_call.1} parent=5 // pred_check
        _
      $region30: #{tpu_custom_call.1} parent=5 // pred_check_branch
        %199 = sbr.rel (%p196) target = $region32
      $region31: #{tpu_custom_call.1} parent=5 // pred_region
        %s200 = ssub.s32 %s15, 1
        %s201 = sand.u32 %s96, 1
        %s202 = scalar_lea.sflag [#allocation3], %s201
        %s203 = sand.u32 %s96, 1
        %s204 = smul.addr %s203, 8
        %s205 = scalar_lea.vmem [#allocation2], %s204
        // Predicated region
        $region33: #{tpu_custom_call.1} parent=31 // pred_check
          %p206 = pneg %p109
        $region34: #{tpu_custom_call.1} parent=31 // pred_check_branch
          %208 = sbr.rel (%p206) target = $region36
        $region35: #{tpu_custom_call.1} parent=31 // pred_region
          %209 = dma.done %s202, 128
        $region36: #{tpu_custom_call.1} parent=31 // pred_fallthru
          _
        %p210 = scmp.lt.s32.totalorder %s24, 1
        %s211 = scalar_select %p210, %s24, 1
        %p212 = scmp.lt.s32.totalorder %s25, 0
        %s213 = scalar_select %p212, %s25, 0
        %s214 = sadd.s32 %s213, %s211
        %s215 = smul.addr %s214, 8
        %s216 = scalar_lea.vmem %s0, %s215
        %p217 = pneg %p55
        %p218 = pneg %p52
        %p219 = scmp.lt.s32.totalorder %s24, 1
        %s220 = scalar_select %p219, %s24, 1
        %p221 = scmp.lt.s32.totalorder %s25, 0
        %s222 = scalar_select %p221, %s25, 0
        %s223 = sadd.s32 %s222, %s220
        %s224 = smul.addr %s223, 8
        %s225 = scalar_lea.vmem %s1, %s224
        %p226 = pneg %p83
        %p227 = pneg %p80
        %s228 = sand.u32 %s96, 1
        %s229 = scalar_lea.sflag [#allocation3], %s228
        %s230 = sand.u32 %s96, 1
        %s231 = smul.addr %s230, 8
        %s232 = scalar_lea.vmem [#allocation2], %s231
        %p233 = pneg %p109
        %p234 = pneg %p106
        %p235 = pneg %p137
        %p236 = pneg %p134
        %s237 = sand.u32 %s124, 1
        %s238 = scalar_lea.sflag [#allocation4], %s237
        %s239 = sand.u32 %s124, 1
        %s240 = smul.addr %s239, 8
        %s241 = scalar_lea.vmem [#allocation5], %s240
        %p242 = scmp.lt.s32.totalorder %s24, 1
        %s243 = scalar_select %p242, %s24, 1
        %p244 = scmp.lt.s32.totalorder %s25, 0
        %s245 = scalar_select %p244, %s25, 0
        %s246 = sadd.s32 %s245, %s243
        %s247 = smul.addr %s246, 8
        %s248 = scalar_lea.vmem %s0, %s247
        %p249 = scmp.lt.s32.totalorder %s24, 1
        %s250 = scalar_select %p249, %s24, 1
        %p251 = scmp.lt.s32.totalorder %s25, 0
        %s252 = scalar_select %p251, %s25, 0
        %s253 = sadd.s32 %s252, %s250
        %s254 = smul.addr %s253, 8
        %s255 = scalar_lea.vmem %s1, %s254
        %v256 = vld [vmem:[%s248] sm:$0xff]
        %v257 = vand.u32 2147483647, %v256
        %v258 = vsub.f32 0.0, %v257
        %v259 = vmul.f32 %v258, 1.442695
        %v260 = vpow.pop %v259
        %v261 = vadd.f32 %v260, 1.0
        %v262 = vrcp.pop %v261
        %v263 = vmul.f32 1.0, %v262
        %vm264 = vcmp.ge.f32.partialorder %v256, 0.0
        %v265 = vmul.f32 %v260, %v263
        %v266 = vsel %vm264, %v263, %v265
        %v267 = vmul.f32 %v266, %v266
        %v268 = vmul.f32 %v267, 0.75
        %v269 = vsub.f32 1.0, %v266
        %v270 = vadd.f32 %v269, 1e-08
        %v271 = vlog2.pop %v270
        %v272 = vmul.f32 %v271, 0.6931472
        %v273 = vsub.f32 0.0, %v272
        %v274 = vmul.f32 %v268, %v273
        %v275 = vmul.f32 %v269, %v269
        %v276 = vmul.f32 %v275, 0.25
        %v277 = vadd.f32 %v266, 1e-08
        %v278 = vlog2.pop %v277
        %v279 = vmul.f32 %v278, 0.6931472
        %v280 = vsub.f32 0.0, %v279
        %v281 = vmul.f32 %v276, %v280
        %v282 = vsub.f32 %v281, %v274
        %vm283 = vcmask 31744
        %v284 = vsel %vm283, %v282, 0.0
        %285 = vadd.xlane.f32.xlu0 %v284
        %v286 = vpop.xlane.xlu0 %285
        %v287 = vrcp.pop 4.0
        %v288 = vmul.f32 %v286, %v287
        %v289 = vld [vmem:[%s255] sm:$0xff]
        %v290 = vld [vmem:[%s205] sm:$0xff]
        %292 = vset.pattern.permute.xlu0 0
        %293 = vperm.xlu0 %292, %v289
        %v294 = vpop.permute.xlu0 %293
        %v296 = vlaneseq
        %v297 = vshrl.u32 %v296, 7
        %v298 = vsub.s32 0, %v297
        %v299 = vrot.slane %v290, %v298
        %v300 = vsub.f32 %v294, %v299
        %v301 = vand.u32 2147483647, %v300
        %302 = vset.pattern.permute.xlu0 1
        %303 = vperm.xlu0 %302, %v289
        %v304 = vpop.permute.xlu0 %303
        %v306 = vlaneseq
        %v307 = vshrl.u32 %v306, 7
        %v308 = vsub.s32 1, %v307
        %v309 = vrot.slane %v290, %v308
        %v310 = vsub.f32 %v304, %v309
        %v311 = vand.u32 2147483647, %v310
        %v312 = vadd.f32 %v301, %v311
        %313 = vset.pattern.permute.xlu0 2
        %314 = vperm.xlu0 %313, %v289
        %v315 = vpop.permute.xlu0 %314
        %v317 = vlaneseq
        %v318 = vshrl.u32 %v317, 7
        %v319 = vsub.s32 2, %v318
        %v320 = vrot.slane %v290, %v319
        %v321 = vsub.f32 %v315, %v320
        %v322 = vand.u32 2147483647, %v321
        %v323 = vadd.f32 %v312, %v322
        %324 = vset.pattern.permute.xlu0 3
        %325 = vperm.xlu0 %324, %v289
        %v326 = vpop.permute.xlu0 %325
        %v328 = vlaneseq
        %v329 = vshrl.u32 %v328, 7
        %v330 = vsub.s32 3, %v329
        %v331 = vrot.slane %v290, %v330
        %v332 = vsub.f32 %v326, %v331
        %v333 = vand.u32 2147483647, %v332
        %v334 = vadd.f32 %v323, %v333
        %335 = vset.pattern.permute.xlu0 4
        %336 = vperm.xlu0 %335, %v289
        %v337 = vpop.permute.xlu0 %336
        %v339 = vlaneseq
        %v340 = vshrl.u32 %v339, 7
        %v341 = vsub.s32 4, %v340
        %v342 = vrot.slane %v290, %v341
        %v343 = vsub.f32 %v337, %v342
        %v344 = vand.u32 2147483647, %v343
        %v345 = vadd.f32 %v334, %v344
        %346 = vset.pattern.permute.xlu0 5
        %347 = vperm.xlu0 %346, %v289
        %v348 = vpop.permute.xlu0 %347
        %v350 = vlaneseq
        %v351 = vshrl.u32 %v350, 7
        %v352 = vsub.s32 5, %v351
        %v353 = vrot.slane %v290, %v352
        %v354 = vsub.f32 %v348, %v353
        %v355 = vand.u32 2147483647, %v354
        %v356 = vadd.f32 %v345, %v355
        %357 = vset.pattern.permute.xlu0 6
        %358 = vperm.xlu0 %357, %v289
        %v359 = vpop.permute.xlu0 %358
        %v361 = vlaneseq
        %v362 = vshrl.u32 %v361, 7
        %v363 = vsub.s32 6, %v362
        %v364 = vrot.slane %v290, %v363
        %v365 = vsub.f32 %v359, %v364
        %v366 = vand.u32 2147483647, %v365
        %v367 = vadd.f32 %v356, %v366
        %368 = vset.pattern.permute.xlu0 7
        %369 = vperm.xlu0 %368, %v289
        %v370 = vpop.permute.xlu0 %369
        %v372 = vlaneseq
        %v373 = vshrl.u32 %v372, 7
        %v374 = vsub.s32 7, %v373
        %v375 = vrot.slane %v290, %v374
        %v376 = vsub.f32 %v370, %v375
        %v377 = vand.u32 2147483647, %v376
        %v378 = vadd.f32 %v367, %v377
        %v379 = vadd.f32 %v288, %v378
        %380 = vst [vmem:[%s241] sm:$0xff] %v379
        %s381 = sand.u32 %s124, 1
        %s382 = scalar_lea.sflag [#allocation4], %s381
        %s383 = sand.u32 %s124, 1
        %s384 = smul.addr %s383, 8
        %s385 = scalar_lea.vmem [#allocation5], %s384
        // Predicated region
        $region37: #{tpu_custom_call.1} parent=31 // pred_check
          %p386 = pneg %p134
        $region38: #{tpu_custom_call.1} parent=31 // pred_check_branch
          %388 = sbr.rel (%p386) target = $region40
        $region39: #{tpu_custom_call.1} parent=31 // pred_region
          %s390 = ssub.s32 128, 128
          %391 = vsyncadd %s382, %s390
          %s392 = sadd.s32 %s25, %s24
          %s393 = smul.addr %s392, 128
          %s394 = scalar_lea.hbm %s3, %s393
          %s396 = sshll.u32 %s385, 4
          %s397 = int_to_ptr.vmem [resolvable:$true] %s396
          %399 = dma.vmem_to_hbm [thread:$0]  %s397, 128, %s394, %s382
        $region40: #{tpu_custom_call.1} parent=31 // pred_fallthru
          _
      $region32: #{tpu_custom_call.1} parent=5 // pred_fallthru
        _
      %p400 = scmp.le.s32.totalorder 2, %s15
      // Predicated region
      $region41: #{tpu_custom_call.1} parent=5 // pred_check
        %p401 = pneg %p400
      $region42: #{tpu_custom_call.1} parent=5 // pred_check_branch
        %403 = sbr.rel (%p401) target = $region44
      $region43: #{tpu_custom_call.1} parent=5 // pred_region
        %s404 = ssub.s32 %s15, 2
        // Predicated region
        $region45: #{tpu_custom_call.1} parent=43 // pred_check
          %p405 = pneg %p140
        $region46: #{tpu_custom_call.1} parent=43 // pred_check_branch
          %407 = sbr.rel (%p405) target = $region48
        $region47: #{tpu_custom_call.1} parent=43 // pred_region
          %s408 = sand.u32 %s125, 1
          %s409 = scalar_lea.sflag [#allocation4], %s408
          %s410 = sand.u32 %s125, 1
          %s411 = smul.addr %s410, 8
          %s412 = scalar_lea.vmem [#allocation5], %s411
          %413 = dma.done %s409, 128
        $region48: #{tpu_custom_call.1} parent=43 // pred_fallthru
          _
      $region44: #{tpu_custom_call.1} parent=5 // pred_fallthru
        _
    $region6: #{tpu_custom_call.1} parent=1 // loop_footer
      %s19 = sadd.s32 1, %s15
    $region7: #{tpu_custom_call.1} parent=1 // loop_footer_branch
      %14 = sbr.rel target = $region3
    $region8: #{tpu_custom_call.1} parent=1 // loop_exit
      _
    %414 = vsyncpa [#allocation3], 1
    %s415 = scalar_lea.sflag [#allocation3], 1
    %416 = vsyncpa %s415, 1
    %417 = vsyncpa [#allocation4], 1
    %s418 = scalar_lea.sflag [#allocation4], 1
    %419 = vsyncpa %s418, 1

</llo_original>
